<compile_context>
chip_gen: v6e
topology: v6e:2x2x1
jax: 0.10.0
libtpu: 0.0.40
codegen_flags: <defaults>
</compile_context>

<pallas_src>
from functools import partial

import jax
import jax.numpy as jnp
from jax.experimental import pallas as pl
from jax.experimental.pallas import tpu as pltpu

_SUBLANE_BF16 = 16  # bf16 packs 16 rows per vreg sublane group


def _round_up(n, m):
    return ((n + m - 1) // m) * m


def _dqn_mlp_kernel(x_ref, w1_ref, b1_ref, w2_ref, b2_ref, w3_ref, b3_ref, out_ref):
    # One batch tile per grid step; all three matmuls fused.
    # bf16 operands -> MXU at native rate, f32 accumulation, f32 bias + ReLU.
    x = x_ref[...]  # bf16 (block_b, dim_obs)

    h1 = jnp.dot(x, w1_ref[...], preferred_element_type=jnp.float32) + b1_ref[...]
    h1 = jnp.maximum(h1, 0.0).astype(jnp.bfloat16)          # ReLU (f32) -> bf16

    h2 = jnp.dot(h1, w2_ref[...], preferred_element_type=jnp.float32) + b2_ref[...]
    h2 = jnp.maximum(h2, 0.0).astype(jnp.bfloat16)           # ReLU (f32) -> bf16

    out = jnp.dot(h2, w3_ref[...], preferred_element_type=jnp.float32) + b3_ref[...]
    out_ref[...] = out.astype(out_ref.dtype)


@partial(jax.jit, static_argnames=("block_batch",))
def dqn_forward(x, w1, b1, w2, b2, w3, b3, *, block_batch=1024):
    """Forward pass of DQNModel. x: (batch, dim_obs) -> (batch, dim_action) f32.

    Expects params already processed by prepare_params(): bf16 weights of
    shape (in, out) and f32 biases of shape (1, out).
    """
    batch, dim_obs = x.shape
    hidden = w1.shape[1]
    dim_action = w3.shape[1]

    # Batch tiling: choose the number of tiles first, then derive the block
    # size from cdiv(batch, n_tiles) rounded to a multiple of 16, so batch_p
    # never balloons to ~2x the real batch (e.g. batch=513 -> 528, not 1024).
    n_tiles = max(1, pl.cdiv(batch, block_batch))
    if batch >= 256:
        # v7x has 2 TensorCores: make sure the "parallel" grid axis has >= 2
        # steps so both cores get work (no effect on single-TC v5e/v6e).
        n_tiles = max(n_tiles, 2)
    block_b = _round_up(pl.cdiv(batch, n_tiles), _SUBLANE_BF16)
    batch_p = n_tiles * block_b

    # Only batch rows get zero-padded; feature dims stay at their true sizes.
    x_p = x.astype(jnp.bfloat16)
    if batch_p != batch:
        x_p = jnp.pad(x_p, ((0, batch_p - batch), (0, 0)))

    # Weights/biases: constant block index -> fetched once, VMEM-resident.
    # (At hidden=32 they are tiny; if hidden is ever scaled to >=2048, add a
    #  K-dim grid axis + f32 accumulator and set vmem_limit_bytes explicitly.)
    def resident(shape):
        return pl.BlockSpec(shape, lambda i: (0, 0))

    out_p = pl.pallas_call(
        _dqn_mlp_kernel,
        out_shape=jax.ShapeDtypeStruct((batch_p, dim_action), jnp.float32),
        grid=(n_tiles,),
        in_specs=[
            # x: tiled over batch only; last dim == full array dim (legal).
            pl.BlockSpec((block_b, dim_obs), lambda i: (i, 0)),
            resident((dim_obs, hidden)), resident((1, hidden)),
            resident((hidden, hidden)), resident((1, hidden)),
            resident((hidden, dim_action)), resident((1, dim_action)),
        ],
        out_specs=pl.BlockSpec((block_b, dim_action), lambda i: (i, 0)),
        compiler_params=pltpu.CompilerParams(
            # Independent batch tiles -> shard grid steps across both v7x TCs.
            dimension_semantics=("parallel",),
        ),
    )(x_p, w1, b1, w2, b2, w3, b3)

    # Drop batch-row padding (no feature padding to strip).
    return out_p[:batch] if batch_p != batch else out_p


def prepare_params(w1, b1, w2, b2, w3, b3):
    """One-time (per parameter-update) processing: bf16 weights, f32 (1,out) biases.

    Hoisted out of dqn_forward so the per-call path does no weight casting.
    """
    def cast_w(w):
        return jnp.asarray(w, jnp.bfloat16)

    def cast_b(b):
        return jnp.asarray(b, jnp.float32).reshape(1, -1)

    return (cast_w(w1), cast_b(b1), cast_w(w2), cast_b(b2), cast_w(w3), cast_b(b3))


def init_params(key, dim_obs, dim_action, hidden_size):
    # Deterministic init mimicking nn.Linear defaults (uniform +/- 1/sqrt(fan_in)).
    ks = jax.random.split(key, 6)

    def linear(kw, kb, fan_in, fan_out):
        bound = 1.0 / jnp.sqrt(fan_in)
        w = jax.random.uniform(kw, (fan_in, fan_out), jnp.float32, -bound, bound)
        b = jax.random.uniform(kb, (1, fan_out), jnp.float32, -bound, bound)
        return w, b

    w1, b1 = linear(ks[0], ks[1], dim_obs, hidden_size)
    w2, b2 = linear(ks[2], ks[3], hidden_size, hidden_size)
    w3, b3 = linear(ks[4], ks[5], hidden_size, dim_action)
    return w1, b1, w2, b2, w3, b3


if __name__ == "__main__":
    dim_obs, dim_action, hidden_size = 16, 8, 32
    batch = 64  # small replay-style batch; tiling logic also covers batch >> 1024

    key = jax.random.PRNGKey(0)
    k_x, k_p = jax.random.split(key)
    x = jax.random.normal(k_x, (batch, dim_obs), dtype=jnp.float32)

    raw_params = init_params(k_p, dim_obs, dim_action, hidden_size)
    params = prepare_params(*raw_params)  # done once, outside the hot loop

    out = dqn_forward(x, *params)
    jax.block_until_ready(out)

    # Reference check in plain f32 JAX (same math as the PyTorch forward).
    # Kernel uses bf16 matmul inputs -> compare with relaxed tolerance.
    w1, b1, w2, b2, w3, b3 = raw_params
    h1 = jnp.maximum(x @ w1 + b1, 0.0)
    h2 = jnp.maximum(h1 @ w2 + b2, 0.0)
    ref = h2 @ w3 + b3

    assert out.shape == (batch, dim_action)
    max_err = jnp.max(jnp.abs(out - ref))
    assert max_err < 5e-2, f"max abs err {max_err}"

    print("KERNEL_OK")
</pallas_src>

<mosaic_0001>
module attributes {stable_mosaic.version = 11 : i64} {
  func.func @_dqn_mlp_kernel(%arg0: i32, %arg1: memref<64x16xbf16, #tpu.memory_space<vmem>>, %arg2: memref<16x32xbf16, #tpu.memory_space<vmem>>, %arg3: memref<1x32xf32, #tpu.memory_space<vmem>>, %arg4: memref<32x32xbf16, #tpu.memory_space<vmem>>, %arg5: memref<1x32xf32, #tpu.memory_space<vmem>>, %arg6: memref<32x8xbf16, #tpu.memory_space<vmem>>, %arg7: memref<1x8xf32, #tpu.memory_space<vmem>>, %arg8: memref<64x8xf32, #tpu.memory_space<vmem>>) attributes {dimension_semantics = [#tpu.dimension_semantics<parallel>], iteration_bounds = array<i64: 1>, scalar_prefetch = 0 : i64, scratch_operands = 0 : i64, tpu.core_type = #tpu.core_type<tc>, window_params = [{transform_indices = @transform_0, window_bounds = array<i64: 64, 16>}, {pipeline_mode = #tpu.pipeline_mode<synchronous>, transform_indices = @transform_1, window_bounds = array<i64: 16, 32>}, {pipeline_mode = #tpu.pipeline_mode<synchronous>, transform_indices = @transform_2, window_bounds = array<i64: 1, 32>}, {pipeline_mode = #tpu.pipeline_mode<synchronous>, transform_indices = @transform_3, window_bounds = array<i64: 32, 32>}, {pipeline_mode = #tpu.pipeline_mode<synchronous>, transform_indices = @transform_4, window_bounds = array<i64: 1, 32>}, {pipeline_mode = #tpu.pipeline_mode<synchronous>, transform_indices = @transform_5, window_bounds = array<i64: 32, 8>}, {pipeline_mode = #tpu.pipeline_mode<synchronous>, transform_indices = @transform_6, window_bounds = array<i64: 1, 8>}, {transform_indices = @transform_7, window_bounds = array<i64: 64, 8>}]} {
    %c0 = arith.constant 0 : index
    %c0_0 = arith.constant 0 : index
    %0 = vector.load %arg1[%c0, %c0_0] : memref<64x16xbf16, #tpu.memory_space<vmem>>, vector<64x16xbf16>
    %c0_1 = arith.constant 0 : index
    %c0_2 = arith.constant 0 : index
    %1 = vector.load %arg2[%c0_1, %c0_2] : memref<16x32xbf16, #tpu.memory_space<vmem>>, vector<16x32xbf16>
    %cst = arith.constant dense<0.000000e+00> : vector<64x32xf32>
    %2 = tpu.matmul %0, %1, %cst {dimension_numbers = #tpu.dot_dimension_numbers<[1], [0], [0], [1], [0, 0, 1, 1], [], []>} : vector<64x16xbf16>, vector<16x32xbf16>, vector<64x32xf32> -> vector<64x32xf32>
    %c0_3 = arith.constant 0 : index
    %c0_4 = arith.constant 0 : index
    %3 = vector.load %arg3[%c0_3, %c0_4] : memref<1x32xf32, #tpu.memory_space<vmem>>, vector<1x32xf32>
    %4 = vector.broadcast %3 : vector<1x32xf32> to vector<64x32xf32>
    %5 = arith.addf %2, %4 : vector<64x32xf32>
    %cst_5 = arith.constant 0.000000e+00 : f32
    %6 = vector.broadcast %cst_5 : f32 to vector<64x32xf32>
    %7 = arith.maximumf %5, %6 : vector<64x32xf32>
    %8 = arith.truncf %7 : vector<64x32xf32> to vector<64x32xbf16>
    %c0_6 = arith.constant 0 : index
    %c0_7 = arith.constant 0 : index
    %9 = vector.load %arg4[%c0_6, %c0_7] : memref<32x32xbf16, #tpu.memory_space<vmem>>, vector<32x32xbf16>
    %cst_8 = arith.constant dense<0.000000e+00> : vector<64x32xf32>
    %10 = tpu.matmul %8, %9, %cst_8 {dimension_numbers = #tpu.dot_dimension_numbers<[1], [0], [0], [1], [0, 0, 1, 1], [], []>} : vector<64x32xbf16>, vector<32x32xbf16>, vector<64x32xf32> -> vector<64x32xf32>
    %c0_9 = arith.constant 0 : index
    %c0_10 = arith.constant 0 : index
    %11 = vector.load %arg5[%c0_9, %c0_10] : memref<1x32xf32, #tpu.memory_space<vmem>>, vector<1x32xf32>
    %12 = vector.broadcast %11 : vector<1x32xf32> to vector<64x32xf32>
    %13 = arith.addf %10, %12 : vector<64x32xf32>
    %cst_11 = arith.constant 0.000000e+00 : f32
    %14 = vector.broadcast %cst_11 : f32 to vector<64x32xf32>
    %15 = arith.maximumf %13, %14 : vector<64x32xf32>
    %16 = arith.truncf %15 : vector<64x32xf32> to vector<64x32xbf16>
    %c0_12 = arith.constant 0 : index
    %c0_13 = arith.constant 0 : index
    %17 = vector.load %arg6[%c0_12, %c0_13] : memref<32x8xbf16, #tpu.memory_space<vmem>>, vector<32x8xbf16>
    %cst_14 = arith.constant dense<0.000000e+00> : vector<64x8xf32>
    %18 = tpu.matmul %16, %17, %cst_14 {dimension_numbers = #tpu.dot_dimension_numbers<[1], [0], [0], [1], [0, 0, 1, 1], [], []>} : vector<64x32xbf16>, vector<32x8xbf16>, vector<64x8xf32> -> vector<64x8xf32>
    %c0_15 = arith.constant 0 : index
    %c0_16 = arith.constant 0 : index
    %19 = vector.load %arg7[%c0_15, %c0_16] : memref<1x8xf32, #tpu.memory_space<vmem>>, vector<1x8xf32>
    %20 = vector.broadcast %19 : vector<1x8xf32> to vector<64x8xf32>
    %21 = arith.addf %18, %20 : vector<64x8xf32>
    %c0_17 = arith.constant 0 : index
    %c0_18 = arith.constant 0 : index
    %22 = vector.load %arg8[%c0_17, %c0_18] : memref<64x8xf32, #tpu.memory_space<vmem>>, vector<64x8xf32>
    tpu.vector_store %arg8[%c0_17, %c0_18], %21 {strides = array<i32>} : memref<64x8xf32, #tpu.memory_space<vmem>>, vector<64x8xf32>,
    return
  }
  func.func @transform_0(%arg0: i32) -> (i32, i32) {
    %c0_i32 = arith.constant 0 : i32
    %c0_i32_0 = arith.constant 0 : i32
    return %arg0, %c0_i32 : i32, i32
  }
  func.func @transform_1(%arg0: i32) -> (i32, i32) {
    %c0_i32 = arith.constant 0 : i32
    %c0_i32_0 = arith.constant 0 : i32
    %c0_i32_1 = arith.constant 0 : i32
    return %c0_i32, %c0_i32_0 : i32, i32
  }
  func.func @transform_2(%arg0: i32) -> (i32, i32) {
    %c0_i32 = arith.constant 0 : i32
    %c0_i32_0 = arith.constant 0 : i32
    %c0_i32_1 = arith.constant 0 : i32
    return %c0_i32, %c0_i32_0 : i32, i32
  }
  func.func @transform_3(%arg0: i32) -> (i32, i32) {
    %c0_i32 = arith.constant 0 : i32
    %c0_i32_0 = arith.constant 0 : i32
    %c0_i32_1 = arith.constant 0 : i32
    return %c0_i32, %c0_i32_0 : i32, i32
  }
  func.func @transform_4(%arg0: i32) -> (i32, i32) {
    %c0_i32 = arith.constant 0 : i32
    %c0_i32_0 = arith.constant 0 : i32
    %c0_i32_1 = arith.constant 0 : i32
    return %c0_i32, %c0_i32_0 : i32, i32
  }
  func.func @transform_5(%arg0: i32) -> (i32, i32) {
    %c0_i32 = arith.constant 0 : i32
    %c0_i32_0 = arith.constant 0 : i32
    %c0_i32_1 = arith.constant 0 : i32
    return %c0_i32, %c0_i32_0 : i32, i32
  }
  func.func @transform_6(%arg0: i32) -> (i32, i32) {
    %c0_i32 = arith.constant 0 : i32
    %c0_i32_0 = arith.constant 0 : i32
    %c0_i32_1 = arith.constant 0 : i32
    return %c0_i32, %c0_i32_0 : i32, i32
  }
  func.func @transform_7(%arg0: i32) -> (i32, i32) {
    %c0_i32 = arith.constant 0 : i32
    %c0_i32_0 = arith.constant 0 : i32
    return %arg0, %c0_i32 : i32, i32
  }
}

</mosaic_0001>

<llo_original>
// kernel: dqn_forward.1
$region0: #{dqn_forward.1}
  #allocation0 [shape = 'u32[]', space=smem, size = 0x4, offset = 0x4, fixed_abs, tag = 'smem constant byte address 0x4 - core index']
  #allocation1 [shape = 'u32[144,128]{1,0:T(1,128)}', space=vmem, size = 0x12000, scoped, tag = 'internal scratch']
  %s0 = inlined_call_operand.vmem [shape: bf16[64,16], index: 0, kind: input, shape index: {}]
  %s1 = inlined_call_operand.vmem [shape: bf16[16,32], index: 1, kind: input, shape index: {}]
  %s2 = inlined_call_operand.vmem [shape: f32[1,32], index: 2, kind: input, shape index: {}]
  %s3 = inlined_call_operand.vmem [shape: bf16[32,32], index: 3, kind: input, shape index: {}]
  %s4 = inlined_call_operand.vmem [shape: f32[1,32], index: 4, kind: input, shape index: {}]
  %s5 = inlined_call_operand.vmem [shape: bf16[32,8], index: 5, kind: input, shape index: {}]
  %s6 = inlined_call_operand.vmem [shape: f32[1,8], index: 6, kind: input, shape index: {}]
  %s7 = inlined_call_operand.vmem [shape: f32[64,8], index: 7, kind: output, shape index: {}]
  %s8 = sld [smem:[#allocation0]]
  $region38: #{dqn_forward.1} parent=0
    _
  %s10 = ssub.s32 1, %s8
  %s11 = scalar_select 0, %s10, %s8
  // Predicated region
  $region2: #{dqn_forward.1} parent=0 // pred_check
    _
  $region3: #{dqn_forward.1} parent=0 // pred_check_branch
    %13 = sbr.rel (0) target = $region5
  $region4: #{dqn_forward.1} parent=0 // pred_region
    _
  $region5: #{dqn_forward.1} parent=0 // pred_fallthru
    _
  // Predicated region
  $region6: #{dqn_forward.1} parent=0 // pred_check
    _
  $region7: #{dqn_forward.1} parent=0 // pred_check_branch
    %15 = sbr.rel (0) target = $region9
  $region8: #{dqn_forward.1} parent=0 // pred_region
    _
  $region9: #{dqn_forward.1} parent=0 // pred_fallthru
    _
  // Predicated region
  $region10: #{dqn_forward.1} parent=0 // pred_check
    _
  $region11: #{dqn_forward.1} parent=0 // pred_check_branch
    %17 = sbr.rel (0) target = $region13
  $region12: #{dqn_forward.1} parent=0 // pred_region
    _
  $region13: #{dqn_forward.1} parent=0 // pred_fallthru
    _
  // Predicated region
  $region14: #{dqn_forward.1} parent=0 // pred_check
    _
  $region15: #{dqn_forward.1} parent=0 // pred_check_branch
    %19 = sbr.rel (0) target = $region17
  $region16: #{dqn_forward.1} parent=0 // pred_region
    _
  $region17: #{dqn_forward.1} parent=0 // pred_fallthru
    _
  // Predicated region
  $region18: #{dqn_forward.1} parent=0 // pred_check
    _
  $region19: #{dqn_forward.1} parent=0 // pred_check_branch
    %21 = sbr.rel (0) target = $region21
  $region20: #{dqn_forward.1} parent=0 // pred_region
    _
  $region21: #{dqn_forward.1} parent=0 // pred_fallthru
    _
  // Predicated region
  $region22: #{dqn_forward.1} parent=0 // pred_check
    _
  $region23: #{dqn_forward.1} parent=0 // pred_check_branch
    %23 = sbr.rel (0) target = $region25
  $region24: #{dqn_forward.1} parent=0 // pred_region
    _
  $region25: #{dqn_forward.1} parent=0 // pred_fallthru
    _
  // Predicated region
  $region26: #{dqn_forward.1} parent=0 // pred_check
    _
  $region27: #{dqn_forward.1} parent=0 // pred_check_branch
    %25 = sbr.rel (0) target = $region29
  $region28: #{dqn_forward.1} parent=0 // pred_region
    _
  $region29: #{dqn_forward.1} parent=0 // pred_fallthru
    _
  %v27 = vld [vmem:[%s0] sm:$0xf]
  %v28 = vld [vmem:[%s0 + $0x4] sm:$0xf]
  %v29 = vld [vmem:[%s0 + $0x8] sm:$0xf]
  %v30 = vld [vmem:[%s0 + $0xc] sm:$0xf]
  %v31 = vld [vmem:[%s0 + $0x10] sm:$0xf]
  %v32 = vld [vmem:[%s0 + $0x14] sm:$0xf]
  %v33 = vld [vmem:[%s0 + $0x18] sm:$0xf]
  %v34 = vld [vmem:[%s0 + $0x1c] sm:$0xf]
  %v35 = vld [vmem:[%s1] sm:$0xf]
  %v36 = vld [vmem:[%s1 + $0x4] sm:$0xf]
  %v37 = vld [vmem:[%s2] sm:$0x1]
  %v39 = vlaneseq
  %v40 = vshrl.u32 %v39, 7
  %v41 = vsub.s32 0, %v40
  %v42 = vrot.slane %v37, %v41
  %v52 = vunpack.c.l.b16 %v27
  %v53 = vunpack.c.l.b16 %v28
  %v54 = vunpack.c.l.b16 %v29
  %v55 = vunpack.c.l.b16 %v30
  %v56 = vunpack.c.l.b16 %v31
  %v57 = vunpack.c.l.b16 %v32
  %v58 = vunpack.c.l.b16 %v33
  %v59 = vunpack.c.l.b16 %v34
  %v60 = vpack.c.b16 %v53, %v52
  %v61 = vpack.c.b16 %v55, %v54
  %v62 = vpack.c.b16 %v57, %v56
  %v63 = vpack.c.b16 %v59, %v58
  %v66 = vunpack.c.l.b16 %v35
  %v67 = vunpack.c.l.b16 %v36
  %v68 = vpack.c.b16 %v67, %v66
  %vm70 = vcmask 130048
  %v72 = vsel %vm70, %v60, 0
  %v75 = vsel %vm70, %v61, 0
  %v78 = vsel %vm70, %v62, 0
  %v81 = vsel %vm70, %v63, 0
  %83 = vmatprep.subr.bf16.mxu0 0
  %84 = vmatpush1.bf16.msra.mxu0 0
  %85 = vmatprep.subr.bf16.mxu0 0
  %86 = vmatpush1.bf16.msra.mxu0 0
  %87 = vmatprep.subr.bf16.mxu0 0
  %88 = vmatpush1.bf16.msra.mxu0 0
  %89 = vmatprep.subr.bf16.mxu0 0
  %90 = vmatpush1.bf16.msra.mxu0 0
  %91 = vmatprep.subr.bf16.mxu0 0
  %92 = vmatpush1.bf16.msra.mxu0 0
  %93 = vmatprep.subr.bf16.mxu0 0
  %94 = vmatpush1.bf16.msra.mxu0 0
  %95 = vmatprep.subr.bf16.mxu0 0
  %96 = vmatpush1.bf16.msra.mxu0 0
  %97 = vmatprep.subr.bf16.mxu0 0
  %98 = vmatpush1.bf16.msra.mxu0 %v68
  %99 = vmatprep.subr.bf16.mxu0 0
  %100 = vmatpush2.bf16.msra.mxu0 0
  %101 = vmatprep.subr.bf16.mxu0 0
  %102 = vmatpush2.bf16.msra.mxu0 0
  %103 = vmatprep.subr.bf16.mxu0 0
  %104 = vmatpush2.bf16.msra.mxu0 0
  %105 = vmatprep.subr.bf16.mxu0 0
  %106 = vmatpush2.bf16.msra.mxu0 0
  %107 = vmatprep.subr.bf16.mxu0 0
  %108 = vmatpush2.bf16.msra.mxu0 0
  %109 = vmatprep.subr.bf16.mxu0 0
  %110 = vmatpush2.bf16.msra.mxu0 0
  %111 = vmatprep.subr.bf16.mxu0 0
  %112 = vmatpush2.bf16.msra.mxu0 0
  %113 = vmatprep.subr.bf16.mxu0 0
  %114 = vmatpush2.bf16.msra.mxu0 0
  %115 = vmatprep.mubr.bf16.mxu0 0
  %116 = vmatmul.mubr.bf16.gmra.mxu0 %v72
  %v117 = vpop.f32.mrf.mxu0
  %v118 = vadd.f32 %v42, %v117
  %v119 = vpop.f32.mrf.mxu0
  %v120 = vpop.f32.mrf.mxu0
  %v121 = vadd.f32 %v42, %v120
  %v122 = vpop.f32.mrf.mxu0
  %123 = vmatprep.mubr.bf16.mxu0 0
  %124 = vmatmul.mubr.bf16.gmra.mxu0 %v75
  %v125 = vpop.f32.mrf.mxu0
  %v126 = vadd.f32 %v42, %v125
  %v127 = vpop.f32.mrf.mxu0
  %v128 = vpop.f32.mrf.mxu0
  %v129 = vadd.f32 %v42, %v128
  %v130 = vpop.f32.mrf.mxu0
  %131 = vmatprep.mubr.bf16.mxu0 0
  %132 = vmatmul.mubr.bf16.gmra.mxu0 %v78
  %v133 = vpop.f32.mrf.mxu0
  %v134 = vadd.f32 %v42, %v133
  %v135 = vpop.f32.mrf.mxu0
  %v136 = vpop.f32.mrf.mxu0
  %v137 = vadd.f32 %v42, %v136
  %v138 = vpop.f32.mrf.mxu0
  %139 = vmatprep.mubr.bf16.mxu0 0
  %140 = vmatmul.mubr.bf16.gmra.mxu0 %v81
  %v141 = vpop.f32.mrf.mxu0
  %v142 = vadd.f32 %v42, %v141
  %v143 = vpop.f32.mrf.mxu0
  %v144 = vpop.f32.mrf.mxu0
  %v145 = vadd.f32 %v42, %v144
  %v146 = vpop.f32.mrf.mxu0
  %147 = vdwg.mxu0
  %v148 = vmax.f32 %v118, 0.0
  %v149 = vmax.f32 %v121, 0.0
  %v150 = vmax.f32 %v126, 0.0
  %v151 = vmax.f32 %v129, 0.0
  %v152 = vmax.f32 %v134, 0.0
  %v153 = vmax.f32 %v137, 0.0
  %v154 = vmax.f32 %v142, 0.0
  %v155 = vmax.f32 %v145, 0.0
  %v156 = vpack.c.bf16 %v149, %v148
  %v157 = vpack.c.bf16 %v151, %v150
  %v158 = vpack.c.bf16 %v153, %v152
  %v159 = vpack.c.bf16 %v155, %v154
  %v160 = vld [vmem:[%s3] sm:$0xf]
  %v161 = vld [vmem:[%s3 + $0x4] sm:$0xf]
  %v162 = vld [vmem:[%s3 + $0x8] sm:$0xf]
  %v163 = vld [vmem:[%s3 + $0xc] sm:$0xf]
  %v164 = vld [vmem:[%s4] sm:$0x1]
  %v166 = vlaneseq
  %v167 = vshrl.u32 %v166, 7
  %v168 = vsub.s32 0, %v167
  %v169 = vrot.slane %v164, %v168
  %v175 = vunpack.c.l.b16 %v160
  %v176 = vunpack.c.l.b16 %v161
  %v177 = vunpack.c.l.b16 %v162
  %v178 = vunpack.c.l.b16 %v163
  %v179 = vpack.c.b16 %v176, %v175
  %v180 = vpack.c.b16 %v178, %v177
  %vm183 = vcmask 261120
  %v185 = vsel %vm183, %v156, 0
  %v188 = vsel %vm183, %v157, 0
  %v191 = vsel %vm183, %v158, 0
  %v194 = vsel %vm183, %v159, 0
  %196 = vmatprep.subr.bf16.mxu0 0
  %197 = vmatpush1.bf16.msra.mxu0 0
  %198 = vmatprep.subr.bf16.mxu0 0
  %199 = vmatpush1.bf16.msra.mxu0 0
  %200 = vmatprep.subr.bf16.mxu0 0
  %201 = vmatpush1.bf16.msra.mxu0 0
  %202 = vmatprep.subr.bf16.mxu0 0
  %203 = vmatpush1.bf16.msra.mxu0 0
  %204 = vmatprep.subr.bf16.mxu0 0
  %205 = vmatpush1.bf16.msra.mxu0 0
  %206 = vmatprep.subr.bf16.mxu0 0
  %207 = vmatpush1.bf16.msra.mxu0 0
  %208 = vmatprep.subr.bf16.mxu0 0
  %209 = vmatpush1.bf16.msra.mxu0 %v180
  %210 = vmatprep.subr.bf16.mxu0 0
  %211 = vmatpush1.bf16.msra.mxu0 %v179
  %212 = vmatprep.subr.bf16.mxu0 0
  %213 = vmatpush2.bf16.msra.mxu0 0
  %214 = vmatprep.subr.bf16.mxu0 0
  %215 = vmatpush2.bf16.msra.mxu0 0
  %216 = vmatprep.subr.bf16.mxu0 0
  %217 = vmatpush2.bf16.msra.mxu0 0
  %218 = vmatprep.subr.bf16.mxu0 0
  %219 = vmatpush2.bf16.msra.mxu0 0
  %220 = vmatprep.subr.bf16.mxu0 0
  %221 = vmatpush2.bf16.msra.mxu0 0
  %222 = vmatprep.subr.bf16.mxu0 0
  %223 = vmatpush2.bf16.msra.mxu0 0
  %224 = vmatprep.subr.bf16.mxu0 0
  %225 = vmatpush2.bf16.msra.mxu0 0
  %226 = vmatprep.subr.bf16.mxu0 0
  %227 = vmatpush2.bf16.msra.mxu0 0
  %228 = vmatprep.mubr.bf16.mxu0 0
  %229 = vmatmul.mubr.bf16.gmra.mxu0 %v185
  %v230 = vpop.f32.mrf.mxu0
  %v231 = vadd.f32 %v169, %v230
  %v232 = vpop.f32.mrf.mxu0
  %v233 = vpop.f32.mrf.mxu0
  %v234 = vadd.f32 %v169, %v233
  %v235 = vpop.f32.mrf.mxu0
  %236 = vmatprep.mubr.bf16.mxu0 0
  %237 = vmatmul.mubr.bf16.gmra.mxu0 %v188
  %v238 = vpop.f32.mrf.mxu0
  %v239 = vadd.f32 %v169, %v238
  %v240 = vpop.f32.mrf.mxu0
  %v241 = vpop.f32.mrf.mxu0
  %v242 = vadd.f32 %v169, %v241
  %v243 = vpop.f32.mrf.mxu0
  %244 = vmatprep.mubr.bf16.mxu0 0
  %245 = vmatmul.mubr.bf16.gmra.mxu0 %v191
  %v246 = vpop.f32.mrf.mxu0
  %v247 = vadd.f32 %v169, %v246
  %v248 = vpop.f32.mrf.mxu0
  %v249 = vpop.f32.mrf.mxu0
  %v250 = vadd.f32 %v169, %v249
  %v251 = vpop.f32.mrf.mxu0
  %252 = vmatprep.mubr.bf16.mxu0 0
  %253 = vmatmul.mubr.bf16.gmra.mxu0 %v194
  %v254 = vpop.f32.mrf.mxu0
  %v255 = vadd.f32 %v169, %v254
  %v256 = vpop.f32.mrf.mxu0
  %v257 = vpop.f32.mrf.mxu0
  %v258 = vadd.f32 %v169, %v257
  %v259 = vpop.f32.mrf.mxu0
  %260 = vdwg.mxu0
  %v261 = vmax.f32 %v231, 0.0
  %v262 = vmax.f32 %v234, 0.0
  %v263 = vmax.f32 %v239, 0.0
  %v264 = vmax.f32 %v242, 0.0
  %v265 = vmax.f32 %v247, 0.0
  %v266 = vmax.f32 %v250, 0.0
  %v267 = vmax.f32 %v255, 0.0
  %v268 = vmax.f32 %v258, 0.0
  %v269 = vpack.c.bf16 %v262, %v261
  %v270 = vpack.c.bf16 %v264, %v263
  %v271 = vpack.c.bf16 %v266, %v265
  %v272 = vpack.c.bf16 %v268, %v267
  %v273 = vld [vmem:[%s5] sm:$0xf]
  %v274 = vld [vmem:[%s5 + $0x4] sm:$0xf]
  %v275 = vld [vmem:[%s5 + $0x8] sm:$0xf]
  %v276 = vld [vmem:[%s5 + $0xc] sm:$0xf]
  %v277 = vld [vmem:[%s6] sm:$0x1]
  %v279 = vlaneseq
  %v280 = vshrl.u32 %v279, 7
  %v281 = vsub.s32 0, %v280
  %v282 = vrot.slane %v277, %v281
  %v288 = vunpack.c.l.b16 %v273
  %v289 = vunpack.c.l.b16 %v274
  %v290 = vunpack.c.l.b16 %v275
  %v291 = vunpack.c.l.b16 %v276
  %v292 = vpack.c.b16 %v289, %v288
  %v293 = vpack.c.b16 %v291, %v290
  %v297 = vsel %vm183, %v269, 0
  %v300 = vsel %vm183, %v270, 0
  %v303 = vsel %vm183, %v271, 0
  %v306 = vsel %vm183, %v272, 0
  %308 = vmatprep.subr.bf16.mxu0 0
  %309 = vmatpush1.bf16.msra.mxu0 0
  %310 = vmatprep.subr.bf16.mxu0 0
  %311 = vmatpush1.bf16.msra.mxu0 0
  %312 = vmatprep.subr.bf16.mxu0 0
  %313 = vmatpush1.bf16.msra.mxu0 0
  %314 = vmatprep.subr.bf16.mxu0 0
  %315 = vmatpush1.bf16.msra.mxu0 0
  %316 = vmatprep.subr.bf16.mxu0 0
  %317 = vmatpush1.bf16.msra.mxu0 0
  %318 = vmatprep.subr.bf16.mxu0 0
  %319 = vmatpush1.bf16.msra.mxu0 0
  %320 = vmatprep.subr.bf16.mxu0 0
  %321 = vmatpush1.bf16.msra.mxu0 %v293
  %322 = vmatprep.subr.bf16.mxu0 0
  %323 = vmatpush1.bf16.msra.mxu0 %v292
  %324 = vmatprep.subr.bf16.mxu0 0
  %325 = vmatpush2.bf16.msra.mxu0 0
  %326 = vmatprep.subr.bf16.mxu0 0
  %327 = vmatpush2.bf16.msra.mxu0 0
  %328 = vmatprep.subr.bf16.mxu0 0
  %329 = vmatpush2.bf16.msra.mxu0 0
  %330 = vmatprep.subr.bf16.mxu0 0
  %331 = vmatpush2.bf16.msra.mxu0 0
  %332 = vmatprep.subr.bf16.mxu0 0
  %333 = vmatpush2.bf16.msra.mxu0 0
  %334 = vmatprep.subr.bf16.mxu0 0
  %335 = vmatpush2.bf16.msra.mxu0 0
  %336 = vmatprep.subr.bf16.mxu0 0
  %337 = vmatpush2.bf16.msra.mxu0 0
  %338 = vmatprep.subr.bf16.mxu0 0
  %339 = vmatpush2.bf16.msra.mxu0 0
  %340 = vmatprep.mubr.bf16.mxu0 0
  %341 = vmatmul.mubr.bf16.gmra.mxu0 %v297
  %v342 = vpop.f32.mrf.mxu0
  %v343 = vadd.f32 %v282, %v342
  %v344 = vpop.f32.mrf.mxu0
  %v345 = vpop.f32.mrf.mxu0
  %v346 = vadd.f32 %v282, %v345
  %v347 = vpop.f32.mrf.mxu0
  %348 = vmatprep.mubr.bf16.mxu0 0
  %349 = vmatmul.mubr.bf16.gmra.mxu0 %v300
  %v350 = vpop.f32.mrf.mxu0
  %v351 = vadd.f32 %v282, %v350
  %v352 = vpop.f32.mrf.mxu0
  %v353 = vpop.f32.mrf.mxu0
  %v354 = vadd.f32 %v282, %v353
  %v355 = vpop.f32.mrf.mxu0
  %356 = vmatprep.mubr.bf16.mxu0 0
  %357 = vmatmul.mubr.bf16.gmra.mxu0 %v303
  %v358 = vpop.f32.mrf.mxu0
  %v359 = vadd.f32 %v282, %v358
  %v360 = vpop.f32.mrf.mxu0
  %v361 = vpop.f32.mrf.mxu0
  %v362 = vadd.f32 %v282, %v361
  %v363 = vpop.f32.mrf.mxu0
  %364 = vmatprep.mubr.bf16.mxu0 0
  %365 = vmatmul.mubr.bf16.gmra.mxu0 %v306
  %v366 = vpop.f32.mrf.mxu0
  %v367 = vadd.f32 %v282, %v366
  %v368 = vpop.f32.mrf.mxu0
  %v369 = vpop.f32.mrf.mxu0
  %v370 = vadd.f32 %v282, %v369
  %v371 = vpop.f32.mrf.mxu0
  %372 = vdwg.mxu0
  %vm373 = vcmask 64512
  %374 = vst.msk [vmem:[%s7] sm:$0xff] %vm373, %v343
  %375 = vst.msk [vmem:[%s7 + $0x8] sm:$0xff] %vm373, %v346
  %376 = vst.msk [vmem:[%s7 + $0x10] sm:$0xff] %vm373, %v351
  %377 = vst.msk [vmem:[%s7 + $0x18] sm:$0xff] %vm373, %v354
  %378 = vst.msk [vmem:[%s7 + $0x20] sm:$0xff] %vm373, %v359
  %379 = vst.msk [vmem:[%s7 + $0x28] sm:$0xff] %vm373, %v362
  %380 = vst.msk [vmem:[%s7 + $0x30] sm:$0xff] %vm373, %v367
  %381 = vst.msk [vmem:[%s7 + $0x38] sm:$0xff] %vm373, %v370
  // Predicated region
  $region30: #{dqn_forward.1} parent=0 // pred_check
    _
  $region31: #{dqn_forward.1} parent=0 // pred_check_branch
    %383 = sbr.rel (0) target = $region33
  $region32: #{dqn_forward.1} parent=0 // pred_region
    _
  $region33: #{dqn_forward.1} parent=0 // pred_fallthru
    _
  // Predicated region
  $region34: #{dqn_forward.1} parent=0 // pred_check
    _
  $region35: #{dqn_forward.1} parent=0 // pred_check_branch
    %385 = sbr.rel (0) target = $region37
  $region36: #{dqn_forward.1} parent=0 // pred_region
    _
  $region37: #{dqn_forward.1} parent=0 // pred_fallthru
    _

</llo_original>
